<compile_context>
chip_gen: v5e
topology: v5e:2x2
jax: 0.10.0
libtpu: 0.0.40
codegen_flags: <defaults>
</compile_context>

<pallas_src>
import functools

import jax
import jax.numpy as jnp
import numpy as np
from jax.experimental import pallas as pl
from jax.experimental.pallas import tpu as pltpu

# --- small config consistent with the module ---
B = 2            # batch
S = 8            # sequence length
E = 32           # n_embd / hidden_size
H = 4            # num_attention_heads (must be divisible by mp_num=4)
D = E // H       # head_dim
MP = 4           # mp_num hard-coded in CodeT5pAttention.forward
ROTARY_DIM = 4   # config.rotary_dim (even, <= head_dim)
INNER = 4 * E    # n_inner default (4 * n_embd)
EPS = 1e-5       # layer_norm_epsilon

# column offsets inside the fused projection (fc_in first so the 128-wide slice is
# vreg-aligned; the 32-wide q/k/v slices are cheap regardless)
_FF0 = 0
_QB0 = INNER
_QR0 = INNER + E
_KB0 = INNER + 2 * E
_KR0 = INNER + 3 * E
_V0 = INNER + 4 * E
_PROJ_N = INNER + 5 * E


def _gelu_new(x):
    # ACT2FN["gelu_new"]
    return 0.5 * x * (1.0 + jnp.tanh(jnp.sqrt(2.0 / jnp.pi) * (x + 0.044715 * x * x * x)))


# ---------------------------------------------------------------------------
# Pallas kernel: LayerNorm -> fused projection -> rotary self-attention -> out_proj,
# plus MLP, plus residual.  One grid step over the whole flattened (B*S, E) slab.
# ---------------------------------------------------------------------------
def codet5p_block_kernel(x_ref, gamma_ref, beta_ref,
                         wbig_ref, sin_ref, cos_ref,
                         wout_ref, bfc1_ref, wfc2_ref, bfc2_ref,
                         o_ref):
    x = x_ref[...]                                          # (B*S, E) f32

    # --- ln_1 ---
    mean = jnp.mean(x, axis=-1, keepdims=True)
    var = jnp.mean(jnp.square(x - mean), axis=-1, keepdims=True)
    x_ln = (x - mean) * jax.lax.rsqrt(var + EPS) * gamma_ref[...] + beta_ref[...]

    # --- single fused projection: [fc_in | q | q@R | k | k@R | v] (all head-major cols)
    proj = jnp.dot(x_ln, wbig_ref[...], preferred_element_type=jnp.float32)  # (B*S, INNER+5E)

    ff = proj[:, _FF0:_FF0 + INNER]
    qb = proj[:, _QB0:_QB0 + E]
    qr = proj[:, _QR0:_QR0 + E]
    kb = proj[:, _KB0:_KB0 + E]
    kr = proj[:, _KR0:_KR0 + E]
    v = proj[:, _V0:_V0 + E]

    # --- rotary (rotate_every_two folded into the weights): x*cos + (x@R)*sin ---
    sin = sin_ref[...]                                      # (B*S, E)
    cos = cos_ref[...]
    q = qb * cos + qr * sin                                 # already scaled by 1/sqrt(D)
    k = kb * cos + kr * sin

    # --- batched per-(head, batch) attention; encoder: no causal mask ---
    def to_batched(t):                                      # (B*S, H*D) -> (H*B, S, D)
        return jnp.concatenate(
            [t[:, h * D:(h + 1) * D].reshape(B, S, D) for h in range(H)], axis=0)

    q_b = to_batched(q)
    k_b = to_batched(k)
    v_b = to_batched(v)

    s = jnp.einsum('nqd,nkd->nqk', q_b, k_b,
                   preferred_element_type=jnp.float32)      # (H*B, S, S)
    s = s - jnp.max(s, axis=-1, keepdims=True)
    p = jnp.exp(s)
    p = p * pl.reciprocal(jnp.sum(p, axis=-1, keepdims=True), approx=True)
    ctx = jnp.einsum('nqk,nkd->nqd', p, v_b,
                     preferred_element_type=jnp.float32)    # (H*B, S, D)

    # merge heads back to (B*S, H*D) in vregs (no scratch round trip), then out_proj
    attn = jnp.concatenate(
        [ctx[h * B:(h + 1) * B].reshape(B * S, D) for h in range(H)], axis=-1)
    attn_out = jnp.dot(attn, wout_ref[...], preferred_element_type=jnp.float32)

    # --- MLP (applied to ln_1 output, as in the torch block); fc_in came from the fused matmul
    h1 = _gelu_new(ff + bfc1_ref[...])
    h2 = jnp.dot(h1, wfc2_ref[...], preferred_element_type=jnp.float32) + bfc2_ref[...]

    # --- hidden_states = attn_output + feed_forward + residual ---
    o_ref[...] = attn_out + h2 + x


def codet5p_block(x, params):
    (gamma, beta, w_big, sin, cos, wout, bfc1, wfc2, bfc2) = params

    x_flat = x.reshape(B * S, E)

    def full2d(a):
        return pl.BlockSpec(a.shape, lambda i: (0, 0))

    out_flat = pl.pallas_call(
        codet5p_block_kernel,
        out_shape=jax.ShapeDtypeStruct((B * S, E), jnp.float32),
        grid_spec=pltpu.PrefetchScalarGridSpec(
            num_scalar_prefetch=0,
            grid=(1,),
            in_specs=[
                full2d(x_flat),
                full2d(gamma), full2d(beta),
                full2d(w_big), full2d(sin), full2d(cos),
                full2d(wout), full2d(bfc1), full2d(wfc2), full2d(bfc2),
            ],
            out_specs=pl.BlockSpec((B * S, E), lambda i: (0, 0)),
        ),
        compiler_params=pltpu.CompilerParams(
            dimension_semantics=("arbitrary",)),
    )(x_flat, gamma, beta, w_big, sin, cos, wout, bfc1, wfc2, bfc2)

    return out_flat.reshape(B, S, E)


# ---------------------------------------------------------------------------
# Plain-JAX glue: deterministic parameter init + weight/rotary precomputation.
# ---------------------------------------------------------------------------
def init_params(key):
    ks = jax.random.split(key, 8)
    sc = 0.02
    w_qkv = sc * jax.random.normal(ks[0], (3 * E, E), jnp.float32)      # nn.Linear(E, 3E, bias=False).weight
    w_out = sc * jax.random.normal(ks[1], (E, E), jnp.float32)          # out_proj.weight
    w_fc_in = sc * jax.random.normal(ks[2], (INNER, E), jnp.float32)    # fc_in.weight
    b_fc_in = sc * jax.random.normal(ks[3], (INNER,), jnp.float32)      # fc_in.bias
    w_fc_out = sc * jax.random.normal(ks[4], (E, INNER), jnp.float32)   # fc_out.weight
    b_fc_out = sc * jax.random.normal(ks[5], (E,), jnp.float32)         # fc_out.bias
    gamma = 1.0 + 0.1 * jax.random.normal(ks[6], (E,), jnp.float32)     # ln_1.weight
    beta = 0.1 * jax.random.normal(ks[7], (E,), jnp.float32)            # ln_1.bias
    return w_qkv, w_out, w_fc_in, b_fc_in, w_fc_out, b_fc_out, gamma, beta


def prepare(w_qkv, w_out, w_fc_in, b_fc_in, w_fc_out, b_fc_out, gamma, beta):
    local_dim = E // MP
    heads_per_mp = H // MP

    # fold the (mp_num split -> q/v/k split -> _split_heads) column permutation into weights
    wt = jnp.asarray(w_qkv).T.reshape(E, MP, 3 * local_dim)             # (E, mp, 3*local)

    def split_heads_cols(wp):                                           # (E, mp, local) -> (E, H*D)
        return wp.reshape(E, MP, heads_per_mp, D).reshape(E, E)

    wq = split_heads_cols(wt[:, :, :local_dim])
    wv = split_heads_cols(wt[:, :, local_dim:2 * local_dim])
    wk = split_heads_cols(wt[:, :, 2 * local_dim:])

    # rotate_every_two as a signed permutation (D,D), block-diagonal over heads (E,E)
    r = np.zeros((D, D), np.float32)
    for i in range(D // 2):
        r[2 * i + 1, 2 * i] = -1.0
        r[2 * i, 2 * i + 1] = 1.0
    rot = jnp.asarray(np.kron(np.eye(H, dtype=np.float32), r))

    # fold 1/sqrt(head_dim) attention scale into the query weights
    scale = np.float32(1.0 / np.sqrt(D))
    wq_s = wq * scale
    wq_rot = wq_s @ rot           # (x @ Wq) @ R == x @ (Wq @ R)
    wk_rot = wk @ rot

    # one fused projection weight: [fc_in | q | q@R | k | k@R | v]
    w_big = jnp.concatenate(
        [jnp.asarray(w_fc_in).T, wq_s, wq_rot, wk, wk_rot, wv], axis=1)  # (E, INNER+5E)
    assert w_big.shape == (E, _PROJ_N)

    # fixed_pos_embedding + duplicate_interleave, padded so pass-dims are identity,
    # tiled head-major over E and over batch rows (row b*S+s carries position s)
    inv_freq = 1.0 / (10000.0 ** (np.arange(0, ROTARY_DIM, 2, dtype=np.float32) / ROTARY_DIM))
    sinusoid = np.einsum("i,j->ij", np.arange(S, dtype=np.float32), inv_freq)
    sin_d = np.repeat(np.sin(sinusoid), 2, axis=-1)
    cos_d = np.repeat(np.cos(sinusoid), 2, axis=-1)
    sin_h = np.concatenate([sin_d, np.zeros((S, D - ROTARY_DIM), np.float32)], axis=-1)
    cos_h = np.concatenate([cos_d, np.ones((S, D - ROTARY_DIM), np.float32)], axis=-1)
    sin = jnp.asarray(np.tile(np.tile(sin_h, (1, H)), (B, 1)))          # (B*S, E)
    cos = jnp.asarray(np.tile(np.tile(cos_h, (1, H)), (B, 1)))

    return (gamma.reshape(1, E), beta.reshape(1, E),
            w_big, sin, cos,
            jnp.asarray(w_out).T,
            b_fc_in.reshape(1, INNER),
            jnp.asarray(w_fc_out).T, b_fc_out.reshape(1, E))


# ---------------------------------------------------------------------------
# Pure-JAX reference mirroring the torch forward literally (for validation).
# ---------------------------------------------------------------------------
def reference_block(x, w_qkv, w_out, w_fc_in, b_fc_in, w_fc_out, b_fc_out, gamma, beta):
    dot = functools.partial(jnp.matmul, precision=jax.lax.Precision.HIGHEST)

    def duplicate_interleave(m):
        return jnp.repeat(m, 2, axis=-1)

    def rotate_every_two(t):
        t1 = t[..., ::2]
        t2 = t[..., 1::2]
        return jnp.stack((-t2, t1), axis=-1).reshape(t.shape)

    def apply_rope(t, sincos):
        sin_, cos_ = (duplicate_interleave(u)[None, :, None, :] for u in sincos)
        return t * cos_ + rotate_every_two(t) * sin_

    residual = x
    mu = jnp.mean(x, axis=-1, keepdims=True)
    var = jnp.mean(jnp.square(x - mu), axis=-1, keepdims=True)
    x_ln = (x - mu) / jnp.sqrt(var + EPS) * gamma + beta

    qkv = dot(x_ln, w_qkv.T)
    local_dim = E // MP
    qkv_split = qkv.reshape(B, S, MP, 3 * local_dim)
    query = qkv_split[..., :local_dim]
    value = qkv_split[..., local_dim:2 * local_dim]
    key = qkv_split[..., 2 * local_dim:]

    def split_heads(t):
        return t.reshape(B, S, MP, H // MP, D).reshape(B, S, H, D)

    query, key, value = split_heads(query), split_heads(key), split_heads(value)
    value = value.transpose(0, 2, 1, 3)

    inv_freq = 1.0 / (10000.0 ** (jnp.arange(0, ROTARY_DIM, 2, dtype=jnp.float32) / ROTARY_DIM))
    sinusoid = jnp.einsum("i,j->ij", jnp.arange(S, dtype=jnp.float32), inv_freq)
    sincos = (jnp.sin(sinusoid), jnp.cos(sinusoid))
    k_rot = apply_rope(key[..., :ROTARY_DIM], sincos)
    q_rot = apply_rope(query[..., :ROTARY_DIM], sincos)
    key = jnp.concatenate([k_rot, key[..., ROTARY_DIM:]], axis=-1).transpose(0, 2, 1, 3)
    query = jnp.concatenate([q_rot, query[..., ROTARY_DIM:]], axis=-1).transpose(0, 2, 1, 3)

    aw = dot(query, key.transpose(0, 1, 3, 2)) / jnp.sqrt(jnp.float32(D))
    aw = jax.nn.softmax(aw, axis=-1)
    attn = dot(aw, value).transpose(0, 2, 1, 3).reshape(B, S, E)
    attn = dot(attn, w_out.T)

    ff = dot(x_ln, w_fc_in.T) + b_fc_in
    ff = _gelu_new(ff)
    ff = dot(ff, w_fc_out.T) + b_fc_out
    return attn + ff + residual


if __name__ == "__main__":
    key = jax.random.PRNGKey(0)
    kx, kp = jax.random.split(key)
    x = jax.random.normal(kx, (B, S, E), jnp.float32)

    raw = init_params(kp)
    params = prepare(*raw)

    out = codet5p_block(x, params)
    out = jax.block_until_ready(out)

    assert out.shape == (B, S, E)
    assert bool(jnp.all(jnp.isfinite(out)))

    ref = reference_block(x, *raw)
    np.testing.assert_allclose(np.asarray(out), np.asarray(ref), rtol=2e-2, atol=2e-2)

    print("KERNEL_OK")
</pallas_src>

<mosaic_0001>
module attributes {stable_mosaic.version = 11 : i64} {
  func.func @codet5p_block_kernel(%arg0: i32, %arg1: memref<16x32xf32, #tpu.memory_space<vmem>>, %arg2: memref<1x32xf32, #tpu.memory_space<vmem>>, %arg3: memref<1x32xf32, #tpu.memory_space<vmem>>, %arg4: memref<32x288xf32, #tpu.memory_space<vmem>>, %arg5: memref<16x32xf32, #tpu.memory_space<vmem>>, %arg6: memref<16x32xf32, #tpu.memory_space<vmem>>, %arg7: memref<32x32xf32, #tpu.memory_space<vmem>>, %arg8: memref<1x128xf32, #tpu.memory_space<vmem>>, %arg9: memref<128x32xf32, #tpu.memory_space<vmem>>, %arg10: memref<1x32xf32, #tpu.memory_space<vmem>>, %arg11: memref<16x32xf32, #tpu.memory_space<vmem>>) attributes {dimension_semantics = [#tpu.dimension_semantics<arbitrary>], iteration_bounds = array<i64: 1>, scalar_prefetch = 0 : i64, scratch_operands = 0 : i64, tpu.core_type = #tpu.core_type<tc>, window_params = [{pipeline_mode = #tpu.pipeline_mode<synchronous>, transform_indices = @transform_0, window_bounds = array<i64: 16, 32>}, {pipeline_mode = #tpu.pipeline_mode<synchronous>, transform_indices = @transform_1, window_bounds = array<i64: 1, 32>}, {pipeline_mode = #tpu.pipeline_mode<synchronous>, transform_indices = @transform_2, window_bounds = array<i64: 1, 32>}, {pipeline_mode = #tpu.pipeline_mode<synchronous>, transform_indices = @transform_3, window_bounds = array<i64: 32, 288>}, {pipeline_mode = #tpu.pipeline_mode<synchronous>, transform_indices = @transform_4, window_bounds = array<i64: 16, 32>}, {pipeline_mode = #tpu.pipeline_mode<synchronous>, transform_indices = @transform_5, window_bounds = array<i64: 16, 32>}, {pipeline_mode = #tpu.pipeline_mode<synchronous>, transform_indices = @transform_6, window_bounds = array<i64: 32, 32>}, {pipeline_mode = #tpu.pipeline_mode<synchronous>, transform_indices = @transform_7, window_bounds = array<i64: 1, 128>}, {pipeline_mode = #tpu.pipeline_mode<synchronous>, transform_indices = @transform_8, window_bounds = array<i64: 128, 32>}, {pipeline_mode = #tpu.pipeline_mode<synchronous>, transform_indices = @transform_9, window_bounds = array<i64: 1, 32>}, {pipeline_mode = #tpu.pipeline_mode<synchronous>, transform_indices = @transform_10, window_bounds = array<i64: 16, 32>}]} {
    %c0 = arith.constant 0 : index
    %c0_0 = arith.constant 0 : index
    %0 = vector.load %arg1[%c0, %c0_0] : memref<16x32xf32, #tpu.memory_space<vmem>>, vector<16x32xf32>
    %cst = arith.constant dense<0.000000e+00> : vector<16xf32>
    %1 = vector.multi_reduction <add>, %0, %cst [1] : vector<16x32xf32> to vector<16xf32>
    %2 = vector.shape_cast %1 : vector<16xf32> to vector<16x1xf32>
    %cst_1 = arith.constant 3.200000e+01 : f32
    %3 = vector.broadcast %cst_1 : f32 to vector<16x1xf32>
    %4 = arith.divf %2, %3 : vector<16x1xf32>
    %5 = vector.broadcast %4 : vector<16x1xf32> to vector<16x32xf32>
    %6 = arith.subf %0, %5 : vector<16x32xf32>
    %7 = arith.mulf %6, %6 : vector<16x32xf32>
    %cst_2 = arith.constant dense<0.000000e+00> : vector<16xf32>
    %8 = vector.multi_reduction <add>, %7, %cst_2 [1] : vector<16x32xf32> to vector<16xf32>
    %9 = vector.shape_cast %8 : vector<16xf32> to vector<16x1xf32>
    %cst_3 = arith.constant 3.200000e+01 : f32
    %10 = vector.broadcast %cst_3 : f32 to vector<16x1xf32>
    %11 = arith.divf %9, %10 : vector<16x1xf32>
    %12 = vector.broadcast %4 : vector<16x1xf32> to vector<16x32xf32>
    %13 = arith.subf %0, %12 : vector<16x32xf32>
    %cst_4 = arith.constant 9.99999974E-6 : f32
    %14 = vector.broadcast %cst_4 : f32 to vector<16x1xf32>
    %15 = arith.addf %11, %14 : vector<16x1xf32>
    %16 = math.rsqrt %15 : vector<16x1xf32>
    %17 = vector.broadcast %16 : vector<16x1xf32> to vector<16x32xf32>
    %18 = arith.mulf %13, %17 : vector<16x32xf32>
    %c0_5 = arith.constant 0 : index
    %c0_6 = arith.constant 0 : index
    %19 = vector.load %arg2[%c0_5, %c0_6] : memref<1x32xf32, #tpu.memory_space<vmem>>, vector<1x32xf32>
    %20 = vector.broadcast %19 : vector<1x32xf32> to vector<16x32xf32>
    %21 = arith.mulf %18, %20 : vector<16x32xf32>
    %c0_7 = arith.constant 0 : index
    %c0_8 = arith.constant 0 : index
    %22 = vector.load %arg3[%c0_7, %c0_8] : memref<1x32xf32, #tpu.memory_space<vmem>>, vector<1x32xf32>
    %23 = vector.broadcast %22 : vector<1x32xf32> to vector<16x32xf32>
    %24 = arith.addf %21, %23 : vector<16x32xf32>
    %c0_9 = arith.constant 0 : index
    %c0_10 = arith.constant 0 : index
    %25 = vector.load %arg4[%c0_9, %c0_10] : memref<32x288xf32, #tpu.memory_space<vmem>>, vector<32x288xf32>
    %cst_11 = arith.constant dense<0.000000e+00> : vector<16x288xf32>
    %26 = tpu.matmul %24, %25, %cst_11 {dimension_numbers = #tpu.dot_dimension_numbers<[1], [0], [0], [1], [0, 0, 1, 1], [], []>} : vector<16x32xf32>, vector<32x288xf32>, vector<16x288xf32> -> vector<16x288xf32>
    %27 = vector.extract_strided_slice %26 {offsets = [0, 0], sizes = [16, 128], strides = [1, 1]} : vector<16x288xf32> to vector<16x128xf32>
    %28 = vector.extract_strided_slice %26 {offsets = [0, 128], sizes = [16, 32], strides = [1, 1]} : vector<16x288xf32> to vector<16x32xf32>
    %29 = vector.extract_strided_slice %26 {offsets = [0, 160], sizes = [16, 32], strides = [1, 1]} : vector<16x288xf32> to vector<16x32xf32>
    %30 = vector.extract_strided_slice %26 {offsets = [0, 192], sizes = [16, 32], strides = [1, 1]} : vector<16x288xf32> to vector<16x32xf32>
    %31 = vector.extract_strided_slice %26 {offsets = [0, 224], sizes = [16, 32], strides = [1, 1]} : vector<16x288xf32> to vector<16x32xf32>
    %32 = vector.extract_strided_slice %26 {offsets = [0, 256], sizes = [16, 32], strides = [1, 1]} : vector<16x288xf32> to vector<16x32xf32>
    %c0_12 = arith.constant 0 : index
    %c0_13 = arith.constant 0 : index
    %33 = vector.load %arg5[%c0_12, %c0_13] : memref<16x32xf32, #tpu.memory_space<vmem>>, vector<16x32xf32>
    %c0_14 = arith.constant 0 : index
    %c0_15 = arith.constant 0 : index
    %34 = vector.load %arg6[%c0_14, %c0_15] : memref<16x32xf32, #tpu.memory_space<vmem>>, vector<16x32xf32>
    %35 = arith.mulf %28, %34 : vector<16x32xf32>
    %36 = arith.mulf %29, %33 : vector<16x32xf32>
    %37 = arith.addf %35, %36 : vector<16x32xf32>
    %38 = arith.mulf %30, %34 : vector<16x32xf32>
    %39 = arith.mulf %31, %33 : vector<16x32xf32>
    %40 = arith.addf %38, %39 : vector<16x32xf32>
    %41 = vector.extract_strided_slice %37 {offsets = [0, 0], sizes = [16, 8], strides = [1, 1]} : vector<16x32xf32> to vector<16x8xf32>
    %42 = vector.shape_cast %41 : vector<16x8xf32> to vector<2x8x8xf32>
    %43 = vector.extract_strided_slice %37 {offsets = [0, 8], sizes = [16, 8], strides = [1, 1]} : vector<16x32xf32> to vector<16x8xf32>
    %44 = vector.shape_cast %43 : vector<16x8xf32> to vector<2x8x8xf32>
    %45 = vector.extract_strided_slice %37 {offsets = [0, 16], sizes = [16, 8], strides = [1, 1]} : vector<16x32xf32> to vector<16x8xf32>
    %46 = vector.shape_cast %45 : vector<16x8xf32> to vector<2x8x8xf32>
    %47 = vector.extract_strided_slice %37 {offsets = [0, 24], sizes = [16, 8], strides = [1, 1]} : vector<16x32xf32> to vector<16x8xf32>
    %48 = vector.shape_cast %47 : vector<16x8xf32> to vector<2x8x8xf32>
    %49 = tpu.concatenate %42, %44, %46, %48 in 0 : vector<2x8x8xf32>, vector<2x8x8xf32>, vector<2x8x8xf32>, vector<2x8x8xf32> -> vector<8x8x8xf32>
    %50 = vector.extract_strided_slice %40 {offsets = [0, 0], sizes = [16, 8], strides = [1, 1]} : vector<16x32xf32> to vector<16x8xf32>
    %51 = vector.shape_cast %50 : vector<16x8xf32> to vector<2x8x8xf32>
    %52 = vector.extract_strided_slice %40 {offsets = [0, 8], sizes = [16, 8], strides = [1, 1]} : vector<16x32xf32> to vector<16x8xf32>
    %53 = vector.shape_cast %52 : vector<16x8xf32> to vector<2x8x8xf32>
    %54 = vector.extract_strided_slice %40 {offsets = [0, 16], sizes = [16, 8], strides = [1, 1]} : vector<16x32xf32> to vector<16x8xf32>
    %55 = vector.shape_cast %54 : vector<16x8xf32> to vector<2x8x8xf32>
    %56 = vector.extract_strided_slice %40 {offsets = [0, 24], sizes = [16, 8], strides = [1, 1]} : vector<16x32xf32> to vector<16x8xf32>
    %57 = vector.shape_cast %56 : vector<16x8xf32> to vector<2x8x8xf32>
    %58 = tpu.concatenate %51, %53, %55, %57 in 0 : vector<2x8x8xf32>, vector<2x8x8xf32>, vector<2x8x8xf32>, vector<2x8x8xf32> -> vector<8x8x8xf32>
    %59 = vector.extract_strided_slice %32 {offsets = [0, 0], sizes = [16, 8], strides = [1, 1]} : vector<16x32xf32> to vector<16x8xf32>
    %60 = vector.shape_cast %59 : vector<16x8xf32> to vector<2x8x8xf32>
    %61 = vector.extract_strided_slice %32 {offsets = [0, 8], sizes = [16, 8], strides = [1, 1]} : vector<16x32xf32> to vector<16x8xf32>
    %62 = vector.shape_cast %61 : vector<16x8xf32> to vector<2x8x8xf32>
    %63 = vector.extract_strided_slice %32 {offsets = [0, 16], sizes = [16, 8], strides = [1, 1]} : vector<16x32xf32> to vector<16x8xf32>
    %64 = vector.shape_cast %63 : vector<16x8xf32> to vector<2x8x8xf32>
    %65 = vector.extract_strided_slice %32 {offsets = [0, 24], sizes = [16, 8], strides = [1, 1]} : vector<16x32xf32> to vector<16x8xf32>
    %66 = vector.shape_cast %65 : vector<16x8xf32> to vector<2x8x8xf32>
    %67 = tpu.concatenate %60, %62, %64, %66 in 0 : vector<2x8x8xf32>, vector<2x8x8xf32>, vector<2x8x8xf32>, vector<2x8x8xf32> -> vector<8x8x8xf32>
    "tpu.trace_start"() <{level = 10 : i32, message = "nqd,nkd->nqk"}> : () -> ()
    %cst_16 = arith.constant dense<0.000000e+00> : vector<8x8x8xf32>
    %68 = tpu.matmul %49, %58, %cst_16 {dimension_numbers = #tpu.dot_dimension_numbers<[2], [2], [1], [1], [0, 0, 0, 1, 1, 1], [0], [0]>} : vector<8x8x8xf32>, vector<8x8x8xf32>, vector<8x8x8xf32> -> vector<8x8x8xf32>
    "tpu.trace_stop"() : () -> ()
    %cst_17 = arith.constant dense<0xFF800000> : vector<8x8xf32>
    %69 = vector.multi_reduction <maximumf>, %68, %cst_17 [2] : vector<8x8x8xf32> to vector<8x8xf32>
    %70 = vector.shape_cast %69 : vector<8x8xf32> to vector<8x8x1xf32>
    %71 = vector.broadcast %70 : vector<8x8x1xf32> to vector<8x8x8xf32>
    %72 = arith.subf %68, %71 : vector<8x8x8xf32>
    %73 = math.exp %72 : vector<8x8x8xf32>
    %cst_18 = arith.constant dense<0.000000e+00> : vector<8x8xf32>
    %74 = vector.multi_reduction <add>, %73, %cst_18 [2] : vector<8x8x8xf32> to vector<8x8xf32>
    %75 = vector.shape_cast %74 : vector<8x8xf32> to vector<8x8x1xf32>
    %76 = tpu.reciprocal %75 {approx = true} : vector<8x8x1xf32> -> vector<8x8x1xf32>
    %77 = vector.broadcast %76 : vector<8x8x1xf32> to vector<8x8x8xf32>
    %78 = arith.mulf %73, %77 : vector<8x8x8xf32>
    "tpu.trace_start"() <{level = 10 : i32, message = "nqk,nkd->nqd"}> : () -> ()
    %cst_19 = arith.constant dense<0.000000e+00> : vector<8x8x8xf32>
    %79 = tpu.matmul %78, %67, %cst_19 {dimension_numbers = #tpu.dot_dimension_numbers<[2], [1], [1], [2], [0, 0, 0, 1, 1, 2], [0], [0]>} : vector<8x8x8xf32>, vector<8x8x8xf32>, vector<8x8x8xf32> -> vector<8x8x8xf32>
    "tpu.trace_stop"() : () -> ()
    %80 = vector.extract_strided_slice %79 {offsets = [0, 0, 0], sizes = [2, 8, 8], strides = [1, 1, 1]} : vector<8x8x8xf32> to vector<2x8x8xf32>
    %81 = vector.shape_cast %80 : vector<2x8x8xf32> to vector<16x8xf32>
    %82 = vector.extract_strided_slice %79 {offsets = [2, 0, 0], sizes = [2, 8, 8], strides = [1, 1, 1]} : vector<8x8x8xf32> to vector<2x8x8xf32>
    %83 = vector.shape_cast %82 : vector<2x8x8xf32> to vector<16x8xf32>
    %84 = vector.extract_strided_slice %79 {offsets = [4, 0, 0], sizes = [2, 8, 8], strides = [1, 1, 1]} : vector<8x8x8xf32> to vector<2x8x8xf32>
    %85 = vector.shape_cast %84 : vector<2x8x8xf32> to vector<16x8xf32>
    %86 = vector.extract_strided_slice %79 {offsets = [6, 0, 0], sizes = [2, 8, 8], strides = [1, 1, 1]} : vector<8x8x8xf32> to vector<2x8x8xf32>
    %87 = vector.shape_cast %86 : vector<2x8x8xf32> to vector<16x8xf32>
    %88 = tpu.concatenate %81, %83, %85, %87 in 1 : vector<16x8xf32>, vector<16x8xf32>, vector<16x8xf32>, vector<16x8xf32> -> vector<16x32xf32>
    %c0_20 = arith.constant 0 : index
    %c0_21 = arith.constant 0 : index
    %89 = vector.load %arg7[%c0_20, %c0_21] : memref<32x32xf32, #tpu.memory_space<vmem>>, vector<32x32xf32>
    %cst_22 = arith.constant dense<0.000000e+00> : vector<16x32xf32>
    %90 = tpu.matmul %88, %89, %cst_22 {dimension_numbers = #tpu.dot_dimension_numbers<[1], [0], [0], [1], [0, 0, 1, 1], [], []>} : vector<16x32xf32>, vector<32x32xf32>, vector<16x32xf32> -> vector<16x32xf32>
    %c0_23 = arith.constant 0 : index
    %c0_24 = arith.constant 0 : index
    %91 = vector.load %arg8[%c0_23, %c0_24] : memref<1x128xf32, #tpu.memory_space<vmem>>, vector<1x128xf32>
    %92 = vector.broadcast %91 : vector<1x128xf32> to vector<16x128xf32>
    %93 = arith.addf %27, %92 : vector<16x128xf32>
    %cst_25 = arith.constant 5.000000e-01 : f32
    %94 = vector.broadcast %cst_25 : f32 to vector<16x128xf32>
    %95 = arith.mulf %94, %93 : vector<16x128xf32>
    %cst_26 = arith.constant 0.636619746 : f32
    %96 = math.sqrt %cst_26 : f32
    %cst_27 = arith.constant 4.471500e-02 : f32
    %97 = vector.broadcast %cst_27 : f32 to vector<16x128xf32>
    %98 = arith.mulf %97, %93 : vector<16x128xf32>
    %99 = arith.mulf %98, %93 : vector<16x128xf32>
    %100 = arith.mulf %99, %93 : vector<16x128xf32>
    %101 = arith.addf %93, %100 : vector<16x128xf32>
    %102 = vector.broadcast %96 : f32 to vector<16x128xf32>
    %103 = arith.mulf %102, %101 : vector<16x128xf32>
    %104 = math.tanh %103 : vector<16x128xf32>
    %cst_28 = arith.constant 1.000000e+00 : f32
    %105 = vector.broadcast %cst_28 : f32 to vector<16x128xf32>
    %106 = arith.addf %105, %104 : vector<16x128xf32>
    %107 = arith.mulf %95, %106 : vector<16x128xf32>
    %c0_29 = arith.constant 0 : index
    %c0_30 = arith.constant 0 : index
    %108 = vector.load %arg9[%c0_29, %c0_30] : memref<128x32xf32, #tpu.memory_space<vmem>>, vector<128x32xf32>
    %cst_31 = arith.constant dense<0.000000e+00> : vector<16x32xf32>
    %109 = tpu.matmul %107, %108, %cst_31 {dimension_numbers = #tpu.dot_dimension_numbers<[1], [0], [0], [1], [0, 0, 1, 1], [], []>} : vector<16x128xf32>, vector<128x32xf32>, vector<16x32xf32> -> vector<16x32xf32>
    %c0_32 = arith.constant 0 : index
    %c0_33 = arith.constant 0 : index
    %110 = vector.load %arg10[%c0_32, %c0_33] : memref<1x32xf32, #tpu.memory_space<vmem>>, vector<1x32xf32>
    %111 = vector.broadcast %110 : vector<1x32xf32> to vector<16x32xf32>
    %112 = arith.addf %109, %111 : vector<16x32xf32>
    %113 = arith.addf %90, %112 : vector<16x32xf32>
    %114 = arith.addf %113, %0 : vector<16x32xf32>
    %c0_34 = arith.constant 0 : index
    %c0_35 = arith.constant 0 : index
    %115 = vector.load %arg11[%c0_34, %c0_35] : memref<16x32xf32, #tpu.memory_space<vmem>>, vector<16x32xf32>
    tpu.vector_store %arg11[%c0_34, %c0_35], %114 {strides = array<i32>} : memref<16x32xf32, #tpu.memory_space<vmem>>, vector<16x32xf32>,
    return
  }
  func.func @transform_0(%arg0: i32) -> (i32, i32) {
    %c0_i32 = arith.constant 0 : i32
    %c0_i32_0 = arith.constant 0 : i32
    %c0_i32_1 = arith.constant 0 : i32
    return %c0_i32, %c0_i32_0 : i32, i32
  }
  func.func @transform_1(%arg0: i32) -> (i32, i32) {
    %c0_i32 = arith.constant 0 : i32
    %c0_i32_0 = arith.constant 0 : i32
    %c0_i32_1 = arith.constant 0 : i32
    return %c0_i32, %c0_i32_0 : i32, i32
  }
  func.func @transform_2(%arg0: i32) -> (i32, i32) {
    %c0_i32 = arith.constant 0 : i32
    %c0_i32_0 = arith.constant 0 : i32
    %c0_i32_1 = arith.constant 0 : i32
    return %c0_i32, %c0_i32_0 : i32, i32
  }
  func.func @transform_3(%arg0: i32) -> (i32, i32) {
    %c0_i32 = arith.constant 0 : i32
    %c0_i32_0 = arith.constant 0 : i32
    %c0_i32_1 = arith.constant 0 : i32
    return %c0_i32, %c0_i32_0 : i32, i32
  }
  func.func @transform_4(%arg0: i32) -> (i32, i32) {
    %c0_i32 = arith.constant 0 : i32
    %c0_i32_0 = arith.constant 0 : i32
    %c0_i32_1 = arith.constant 0 : i32
    return %c0_i32, %c0_i32_0 : i32, i32
  }
  func.func @transform_5(%arg0: i32) -> (i32, i32) {
    %c0_i32 = arith.constant 0 : i32
    %c0_i32_0 = arith.constant 0 : i32
    %c0_i32_1 = arith.constant 0 : i32
    return %c0_i32, %c0_i32_0 : i32, i32
  }
  func.func @transform_6(%arg0: i32) -> (i32, i32) {
    %c0_i32 = arith.constant 0 : i32
    %c0_i32_0 = arith.constant 0 : i32
    %c0_i32_1 = arith.constant 0 : i32
    return %c0_i32, %c0_i32_0 : i32, i32
  }
  func.func @transform_7(%arg0: i32) -> (i32, i32) {
    %c0_i32 = arith.constant 0 : i32
    %c0_i32_0 = arith.constant 0 : i32
    %c0_i32_1 = arith.constant 0 : i32
    return %c0_i32, %c0_i32_0 : i32, i32
  }
  func.func @transform_8(%arg0: i32) -> (i32, i32) {
    %c0_i32 = arith.constant 0 : i32
    %c0_i32_0 = arith.constant 0 : i32
    %c0_i32_1 = arith.constant 0 : i32
    return %c0_i32, %c0_i32_0 : i32, i32
  }
  func.func @transform_9(%arg0: i32) -> (i32, i32) {
    %c0_i32 = arith.constant 0 : i32
    %c0_i32_0 = arith.constant 0 : i32
    %c0_i32_1 = arith.constant 0 : i32
    return %c0_i32, %c0_i32_0 : i32, i32
  }
  func.func @transform_10(%arg0: i32) -> (i32, i32) {
    %c0_i32 = arith.constant 0 : i32
    %c0_i32_0 = arith.constant 0 : i32
    %c0_i32_1 = arith.constant 0 : i32
    return %c0_i32, %c0_i32_0 : i32, i32
  }
}

</mosaic_0001>

<llo_original>
// kernel: tpu_custom_call.1
$region0: #{tpu_custom_call.1}
  #allocation0 [shape = 'u32[]', space=smem, size = 0x4, offset = 0x4, fixed_abs, tag = 'smem constant byte address 0x4 - core index']
  #allocation1 [shape = 'u32[72,128]{1,0:T(1,128)}', space=vmem, size = 0x9000, scoped, tag = 'internal scratch']
  %s0 = inlined_call_operand.vmem [shape: f32[16,32], index: 0, kind: input, shape index: {}]
  %s1 = inlined_call_operand.vmem [shape: f32[1,32], index: 1, kind: input, shape index: {}]
  %s2 = inlined_call_operand.vmem [shape: f32[1,32], index: 2, kind: input, shape index: {}]
  %s3 = inlined_call_operand.vmem [shape: f32[32,288], index: 3, kind: input, shape index: {}]
  %s4 = inlined_call_operand.vmem [shape: f32[16,32], index: 4, kind: input, shape index: {}]
  %s5 = inlined_call_operand.hbm [shape: f32[16,32], index: 5, kind: input, shape index: {}]
  %s6 = inlined_call_operand.vmem [shape: f32[32,32], index: 6, kind: input, shape index: {}]
  %s7 = inlined_call_operand.vmem [shape: f32[1,128], index: 7, kind: input, shape index: {}]
  %s8 = inlined_call_operand.vmem [shape: f32[128,32], index: 8, kind: input, shape index: {}]
  %s9 = inlined_call_operand.vmem [shape: f32[1,32], index: 9, kind: input, shape index: {}]
  %s10 = inlined_call_operand.hbm [shape: f32[16,32], index: 10, kind: output, shape index: {}]
  %s11 = sld [smem:[#allocation0]]
  $region54: #{tpu_custom_call.1} parent=0
    _
  %s13 = ssub.s32 1, %s11
  %s14 = scalar_select 0, %s13, %s11
  $region1: #{tpu_custom_call.1} parent=0
    #allocation2 [shape = 'u8[8192]{0}', space=vmem, size = 0x2000, scoped, tag = 'input window, operand 5, single buffered']
    #allocation3 [shape = 's32[1]{0}', space=sflag, size = 0x4, scoped, tag = 'scoped memory for tpu_custom_call.1']
    #allocation4 [shape = 's32[1]{0}', space=sflag, size = 0x4, scoped, tag = 'scoped memory for tpu_custom_call.1']
    #allocation5 [shape = 'u8[8192]{0}', space=vmem, size = 0x2000, scoped, tag = 'output window, operand 0, single buffered']
    %15 = vsyncpa [#allocation3], 0
    %16 = vsyncpa [#allocation4], 0
    // Predicated region
    $region2: #{tpu_custom_call.1} parent=1 // pred_check
      _
    $region3: #{tpu_custom_call.1} parent=1 // pred_check_branch
      %18 = sbr.rel (0) target = $region5
    $region4: #{tpu_custom_call.1} parent=1 // pred_region
      _
    $region5: #{tpu_custom_call.1} parent=1 // pred_fallthru
      _
    // Predicated region
    $region6: #{tpu_custom_call.1} parent=1 // pred_check
      _
    $region7: #{tpu_custom_call.1} parent=1 // pred_check_branch
      %20 = sbr.rel (0) target = $region9
    $region8: #{tpu_custom_call.1} parent=1 // pred_region
      _
    $region9: #{tpu_custom_call.1} parent=1 // pred_fallthru
      _
    // Predicated region
    $region10: #{tpu_custom_call.1} parent=1 // pred_check
      _
    $region11: #{tpu_custom_call.1} parent=1 // pred_check_branch
      %22 = sbr.rel (0) target = $region13
    $region12: #{tpu_custom_call.1} parent=1 // pred_region
      _
    $region13: #{tpu_custom_call.1} parent=1 // pred_fallthru
      _
    // Predicated region
    $region14: #{tpu_custom_call.1} parent=1 // pred_check
      _
    $region15: #{tpu_custom_call.1} parent=1 // pred_check_branch
      %24 = sbr.rel (0) target = $region17
    $region16: #{tpu_custom_call.1} parent=1 // pred_region
      _
    $region17: #{tpu_custom_call.1} parent=1 // pred_fallthru
      _
    // Predicated region
    $region18: #{tpu_custom_call.1} parent=1 // pred_check
      _
    $region19: #{tpu_custom_call.1} parent=1 // pred_check_branch
      %26 = sbr.rel (0) target = $region21
    $region20: #{tpu_custom_call.1} parent=1 // pred_region
      _
    $region21: #{tpu_custom_call.1} parent=1 // pred_fallthru
      _
    // Predicated region
    $region22: #{tpu_custom_call.1} parent=1 // pred_check
      _
    $region23: #{tpu_custom_call.1} parent=1 // pred_check_branch
      %28 = sbr.rel (0) target = $region25
    $region24: #{tpu_custom_call.1} parent=1 // pred_region
      %30 = vsyncadd [#allocation3], 0
      %s31 = sshll.u32 %s5, 4
      %s32 = int_to_ptr.hbm [resolvable:$true] %s31
      %s33 = sshll.u32 [#allocation2], 4
      %s34 = int_to_ptr.vmem [resolvable:$true] %s33
      %39 = dma.hbm_to_vmem [thread:$0]  %s32, 256, %s34, [#allocation3], 128, 128, 8
    $region25: #{tpu_custom_call.1} parent=1 // pred_fallthru
      _
    // Predicated region
    $region26: #{tpu_custom_call.1} parent=1 // pred_check
      _
    $region27: #{tpu_custom_call.1} parent=1 // pred_check_branch
      %41 = sbr.rel (0) target = $region29
    $region28: #{tpu_custom_call.1} parent=1 // pred_region
      _
    $region29: #{tpu_custom_call.1} parent=1 // pred_fallthru
      _
    // Predicated region
    $region30: #{tpu_custom_call.1} parent=1 // pred_check
      _
    $region31: #{tpu_custom_call.1} parent=1 // pred_check_branch
      %43 = sbr.rel (0) target = $region33
    $region32: #{tpu_custom_call.1} parent=1 // pred_region
      _
    $region33: #{tpu_custom_call.1} parent=1 // pred_fallthru
      _
    // Predicated region
    $region34: #{tpu_custom_call.1} parent=1 // pred_check
      _
    $region35: #{tpu_custom_call.1} parent=1 // pred_check_branch
      %45 = sbr.rel (0) target = $region37
    $region36: #{tpu_custom_call.1} parent=1 // pred_region
      _
    $region37: #{tpu_custom_call.1} parent=1 // pred_fallthru
      _
    // Predicated region
    $region38: #{tpu_custom_call.1} parent=1 // pred_check
      _
    $region39: #{tpu_custom_call.1} parent=1 // pred_check_branch
      %47 = sbr.rel (0) target = $region41
    $region40: #{tpu_custom_call.1} parent=1 // pred_region
      _
    $region41: #{tpu_custom_call.1} parent=1 // pred_fallthru
      _
    // Predicated region
    $region42: #{tpu_custom_call.1} parent=1 // pred_check
      _
    $region43: #{tpu_custom_call.1} parent=1 // pred_check_branch
      %49 = sbr.rel (0) target = $region45
    $region44: #{tpu_custom_call.1} parent=1 // pred_region
      %51 = dma.done [#allocation3], 256
    $region45: #{tpu_custom_call.1} parent=1 // pred_fallthru
      _
    %v52 = vld [vmem:[%s0] sm:$0xff]
    %v53 = vld [vmem:[%s0 + $0x8] sm:$0xff]
    %vm54 = vcmask 261120
    %v55 = vsel %vm54, %v52, 0.0
    %56 = vadd.xlane.f32.xlu0 %v55
    %v57 = vpop.xlane.xlu0 %56
    %v58 = vsel %vm54, %v53, 0.0
    %59 = vadd.xlane.f32.xlu0 %v58
    %v60 = vpop.xlane.xlu0 %59
    %v61 = vrcp.pop 32.0
    %v62 = vmul.f32 32.0, %v61
    %v63 = vsub.f32 1.0, %v62
    %v64 = vmul.f32 %v61, %v63
    %v65 = vadd.f32 %v61, %v64
    %vm66 = vweird.f32 %v61
    %v67 = vsel %vm66, %v61, %v65
    %v68 = vmul.f32 %v57, %v67
    %v69 = vmul.f32 %v60, %v67
    %v70 = vsub.f32 %v52, %v68
    %v71 = vsub.f32 %v53, %v69
    %v72 = vmul.f32 %v70, %v70
    %v73 = vmul.f32 %v71, %v71
    %v74 = vsel %vm54, %v72, 0.0
    %75 = vadd.xlane.f32.xlu0 %v74
    %v76 = vpop.xlane.xlu0 %75
    %v77 = vsel %vm54, %v73, 0.0
    %78 = vadd.xlane.f32.xlu0 %v77
    %v79 = vpop.xlane.xlu0 %78
    %v80 = vmul.f32 %v76, %v67
    %v81 = vmul.f32 %v79, %v67
    %v82 = vadd.f32 %v80, 1e-05
    %v83 = vadd.f32 %v81, 1e-05
    %v84 = vrsqrt.pop %v82
    %v85 = vmul.f32 %v84, %v82
    %v86 = vmul.f32 %v85, %v84
    %v87 = vmul.f32 0.5, %v86
    %v88 = vsub.f32 1.5, %v87
    %v89 = vmul.f32 %v84, %v88
    %vm90 = vweird.f32 %v82
    %vm91 = vweird.f32 %v84
    %vm92 = vmor %vm90, %vm91
    %v93 = vsel %vm92, %v84, %v89
    %v94 = vrsqrt.pop %v83
    %v95 = vmul.f32 %v94, %v83
    %v96 = vmul.f32 %v95, %v94
    %v97 = vmul.f32 0.5, %v96
    %v98 = vsub.f32 1.5, %v97
    %v99 = vmul.f32 %v94, %v98
    %vm100 = vweird.f32 %v83
    %vm101 = vweird.f32 %v94
    %vm102 = vmor %vm100, %vm101
    %v103 = vsel %vm102, %v94, %v99
    %v104 = vmul.f32 %v70, %v93
    %v105 = vmul.f32 %v71, %v103
    %v106 = vld [vmem:[%s1] sm:$0x1]
    %v108 = vperm.slane %v106, 0
    %v110 = vmul.f32 %v104, %v108
    %v111 = vmul.f32 %v105, %v108
    %v112 = vld [vmem:[%s2] sm:$0x1]
    %v114 = vperm.slane %v112, 0
    %v116 = vadd.f32 %v110, %v114
    %v117 = vadd.f32 %v111, %v114
    %v118 = vld [vmem:[%s3] sm:$0xff]
    %v119 = vld [vmem:[%s3 + $0x8] sm:$0xff]
    %v120 = vld [vmem:[%s3 + $0x10] sm:$0xff]
    %v121 = vld [vmem:[%s3 + $0x18] sm:$0xff]
    %v122 = vld [vmem:[%s3 + $0x20] sm:$0xff]
    %v123 = vld [vmem:[%s3 + $0x28] sm:$0xff]
    %v124 = vld [vmem:[%s3 + $0x30] sm:$0xff]
    %v125 = vld [vmem:[%s3 + $0x38] sm:$0xff]
    %v126 = vld [vmem:[%s3 + $0x40] sm:$0xff]
    %v127 = vld [vmem:[%s3 + $0x48] sm:$0xff]
    %v128 = vld [vmem:[%s3 + $0x50] sm:$0xff]
    %v129 = vld [vmem:[%s3 + $0x58] sm:$0xff]
    %v131 = vsel %vm54, %v116, 0
    %v134 = vsel %vm54, %v117, 0
    %136 = vmatpush.msra.mxu0 0.0
    %137 = vmatpush.msra.mxu0 0.0
    %138 = vmatpush.msra.mxu0 0.0
    %139 = vmatpush.msra.mxu0 0.0
    %140 = vmatpush.msra.mxu0 0.0
    %141 = vmatpush.msra.mxu0 0.0
    %142 = vmatpush.msra.mxu0 0.0
    %143 = vmatpush.msra.mxu0 0.0
    %144 = vmatpush.msra.mxu0 0.0
    %145 = vmatpush.msra.mxu0 0.0
    %146 = vmatpush.msra.mxu0 0.0
    %147 = vmatpush.msra.mxu0 0.0
    %148 = vmatpush.msra.mxu0 %v127
    %149 = vmatpush.msra.mxu0 %v124
    %150 = vmatpush.msra.mxu0 %v121
    %151 = vmatpush.msra.mxu0 %v118
    %152 = vmatmul.f32.gmra.mxu0 %v131
    %v153 = vpop.f32.mrf.mxu0
    %v154 = vadd.f32 0.0, %v153
    %155 = vmatmul.f32.gmra.mxu0 %v134
    %v156 = vpop.f32.mrf.mxu0
    %v157 = vadd.f32 0.0, %v156
    %158 = vdwg.mxu0
    %159 = vmatpush.msra.mxu0 0.0
    %160 = vmatpush.msra.mxu0 0.0
    %161 = vmatpush.msra.mxu0 0.0
    %162 = vmatpush.msra.mxu0 0.0
    %163 = vmatpush.msra.mxu0 0.0
    %164 = vmatpush.msra.mxu0 0.0
    %165 = vmatpush.msra.mxu0 0.0
    %166 = vmatpush.msra.mxu0 0.0
    %167 = vmatpush.msra.mxu0 0.0
    %168 = vmatpush.msra.mxu0 0.0
    %169 = vmatpush.msra.mxu0 0.0
    %170 = vmatpush.msra.mxu0 0.0
    %171 = vmatpush.msra.mxu0 %v128
    %172 = vmatpush.msra.mxu0 %v125
    %173 = vmatpush.msra.mxu0 %v122
    %174 = vmatpush.msra.mxu0 %v119
    %175 = vmatmul.f32.gmra.mxu0 %v131
    %v176 = vpop.f32.mrf.mxu0
    %v177 = vadd.f32 0.0, %v176
    %178 = vmatmul.f32.gmra.mxu0 %v134
    %v179 = vpop.f32.mrf.mxu0
    %v180 = vadd.f32 0.0, %v179
    %181 = vdwg.mxu0
    %182 = vmatpush.msra.mxu0 0.0
    %183 = vmatpush.msra.mxu0 0.0
    %184 = vmatpush.msra.mxu0 0.0
    %185 = vmatpush.msra.mxu0 0.0
    %186 = vmatpush.msra.mxu0 0.0
    %187 = vmatpush.msra.mxu0 0.0
    %188 = vmatpush.msra.mxu0 0.0
    %189 = vmatpush.msra.mxu0 0.0
    %190 = vmatpush.msra.mxu0 0.0
    %191 = vmatpush.msra.mxu0 0.0
    %192 = vmatpush.msra.mxu0 0.0
    %193 = vmatpush.msra.mxu0 0.0
    %194 = vmatpush.msra.mxu0 %v129
    %195 = vmatpush.msra.mxu0 %v126
    %196 = vmatpush.msra.mxu0 %v123
    %197 = vmatpush.msra.mxu0 %v120
    %198 = vmatmul.f32.gmra.mxu0 %v131
    %v199 = vpop.f32.mrf.mxu0
    %v200 = vadd.f32 0.0, %v199
    %201 = vmatmul.f32.gmra.mxu0 %v134
    %v202 = vpop.f32.mrf.mxu0
    %v203 = vadd.f32 0.0, %v202
    %204 = vdwg.mxu0
    %v205 = vld [vmem:[%s4] sm:$0xff]
    %v206 = vld [vmem:[%s4 + $0x8] sm:$0xff]
    %v207 = vld [vmem:[#allocation2] sm:$0xff]
    %v208 = vld [vmem:[#allocation2 + $0x8] sm:$0xff]
    %v209 = vmul.f32 %v177, %v207
    %v210 = vmul.f32 %v180, %v208
    %213 = vrot.lane.b32.xlu0 %v205, 32
    %v214 = vpop.permute.xlu0 %213
    %215 = vrot.lane.b32.xlu0 %v206, 32
    %v216 = vpop.permute.xlu0 %215
    %v219 = vmul.f32 %v177, %v214
    %v220 = vmul.f32 %v180, %v216
    %223 = vrot.lane.b32.xlu0 %v219, 96
    %v224 = vpop.permute.xlu0 %223
    %225 = vrot.lane.b32.xlu0 %v220, 96
    %v226 = vpop.permute.xlu0 %225
    %v229 = vadd.f32 %v209, %v224
    %v230 = vadd.f32 %v210, %v226
    %233 = vrot.lane.b32.xlu0 %v207, 64
    %v234 = vpop.permute.xlu0 %233
    %235 = vrot.lane.b32.xlu0 %v208, 64
    %v236 = vpop.permute.xlu0 %235
    %v239 = vmul.f32 %v177, %v234
    %v240 = vmul.f32 %v180, %v236
    %241 = vrot.lane.b32.xlu0 %v205, 96
    %v242 = vpop.permute.xlu0 %241
    %243 = vrot.lane.b32.xlu0 %v206, 96
    %v244 = vpop.permute.xlu0 %243
    %v247 = vmul.f32 %v177, %v242
    %v248 = vmul.f32 %v180, %v244
    %251 = vrot.lane.b32.xlu0 %v247, 96
    %v252 = vpop.permute.xlu0 %251
    %253 = vrot.lane.b32.xlu0 %v248, 96
    %v254 = vpop.permute.xlu0 %253
    %v257 = vadd.f32 %v239, %v252
    %v258 = vadd.f32 %v240, %v254
    %261 = vrot.lane.b32.xlu0 %v229, 120
    %v262 = vpop.permute.xlu0 %261
    %263 = vrot.lane.b32.xlu0 %v230, 120
    %v264 = vpop.permute.xlu0 %263
    %265 = vrot.lane.b32.xlu0 %v229, 112
    %v266 = vpop.permute.xlu0 %265
    %267 = vrot.lane.b32.xlu0 %v230, 112
    %v268 = vpop.permute.xlu0 %267
    %269 = vrot.lane.b32.xlu0 %v229, 104
    %v270 = vpop.permute.xlu0 %269
    %271 = vrot.lane.b32.xlu0 %v230, 104
    %v272 = vpop.permute.xlu0 %271
    %275 = vrot.lane.b32.xlu0 %v257, 120
    %v276 = vpop.permute.xlu0 %275
    %277 = vrot.lane.b32.xlu0 %v258, 120
    %v278 = vpop.permute.xlu0 %277
    %279 = vrot.lane.b32.xlu0 %v257, 112
    %v280 = vpop.permute.xlu0 %279
    %281 = vrot.lane.b32.xlu0 %v258, 112
    %v282 = vpop.permute.xlu0 %281
    %283 = vrot.lane.b32.xlu0 %v257, 104
    %v284 = vpop.permute.xlu0 %283
    %285 = vrot.lane.b32.xlu0 %v258, 104
    %v286 = vpop.permute.xlu0 %285
    %289 = vrot.lane.b32.xlu0 %v200, 120
    %v290 = vpop.permute.xlu0 %289
    %291 = vrot.lane.b32.xlu0 %v203, 120
    %v292 = vpop.permute.xlu0 %291
    %295 = vrot.lane.b32.xlu0 %v200, 112
    %v296 = vpop.permute.xlu0 %295
    %297 = vrot.lane.b32.xlu0 %v203, 112
    %v298 = vpop.permute.xlu0 %297
    %301 = vrot.lane.b32.xlu0 %v200, 104
    %v302 = vpop.permute.xlu0 %301
    %303 = vrot.lane.b32.xlu0 %v203, 104
    %v304 = vpop.permute.xlu0 %303
    %307 = vrot.lane.b32.xlu0 %v257, 64
    %v308 = vpop.permute.xlu0 %307
    %vm309 = vcmask 64512
    %v310 = vsel %vm309, %v229, 0
    %v312 = vsel %vm309, %v308, 0
    %314 = vmatpush.xpose.msra.mxu0 0.0
    %315 = vmatpush.xpose.msra.mxu0 0.0
    %316 = vmatpush.xpose.msra.mxu0 0.0
    %317 = vmatpush.xpose.msra.mxu0 0.0
    %318 = vmatpush.xpose.msra.mxu0 0.0
    %319 = vmatpush.xpose.msra.mxu0 0.0
    %320 = vmatpush.xpose.msra.mxu0 0.0
    %321 = vmatpush.xpose.msra.mxu0 0.0
    %322 = vmatpush.xpose.msra.mxu0 0.0
    %323 = vmatpush.xpose.msra.mxu0 0.0
    %324 = vmatpush.xpose.msra.mxu0 0.0
    %325 = vmatpush.xpose.msra.mxu0 0.0
    %326 = vmatpush.xpose.msra.mxu0 0.0
    %327 = vmatpush.xpose.msra.mxu0 0.0
    %328 = vmatpush.xpose.msra.mxu0 0.0
    %329 = vmatpush.xpose.msra.mxu0 %v312
    %330 = vmatmul.f32.gmra.mxu0 %v310
    %v331 = vpop.f32.mrf.mxu0
    %v332 = vadd.f32 0.0, %v331
    %333 = vdwg.mxu0
    %334 = vrot.lane.b32.xlu0 %v258, 64
    %v335 = vpop.permute.xlu0 %334
    %v336 = vsel %vm309, %v230, 0
    %v338 = vsel %vm309, %v335, 0
    %340 = vmatpush.xpose.msra.mxu0 0.0
    %341 = vmatpush.xpose.msra.mxu0 0.0
    %342 = vmatpush.xpose.msra.mxu0 0.0
    %343 = vmatpush.xpose.msra.mxu0 0.0
    %344 = vmatpush.xpose.msra.mxu0 0.0
    %345 = vmatpush.xpose.msra.mxu0 0.0
    %346 = vmatpush.xpose.msra.mxu0 0.0
    %347 = vmatpush.xpose.msra.mxu0 0.0
    %348 = vmatpush.xpose.msra.mxu0 0.0
    %349 = vmatpush.xpose.msra.mxu0 0.0
    %350 = vmatpush.xpose.msra.mxu0 0.0
    %351 = vmatpush.xpose.msra.mxu0 0.0
    %352 = vmatpush.xpose.msra.mxu0 0.0
    %353 = vmatpush.xpose.msra.mxu0 0.0
    %354 = vmatpush.xpose.msra.mxu0 0.0
    %355 = vmatpush.xpose.msra.mxu0 %v338
    %356 = vmatmul.f32.gmra.mxu0 %v336
    %v357 = vpop.f32.mrf.mxu0
    %v358 = vadd.f32 0.0, %v357
    %359 = vdwg.mxu0
    %360 = vrot.lane.b32.xlu0 %v276, 64
    %v361 = vpop.permute.xlu0 %360
    %v362 = vsel %vm309, %v262, 0
    %v364 = vsel %vm309, %v361, 0
    %366 = vmatpush.xpose.msra.mxu0 0.0
    %367 = vmatpush.xpose.msra.mxu0 0.0
    %368 = vmatpush.xpose.msra.mxu0 0.0
    %369 = vmatpush.xpose.msra.mxu0 0.0
    %370 = vmatpush.xpose.msra.mxu0 0.0
    %371 = vmatpush.xpose.msra.mxu0 0.0
    %372 = vmatpush.xpose.msra.mxu0 0.0
    %373 = vmatpush.xpose.msra.mxu0 0.0
    %374 = vmatpush.xpose.msra.mxu0 0.0
    %375 = vmatpush.xpose.msra.mxu0 0.0
    %376 = vmatpush.xpose.msra.mxu0 0.0
    %377 = vmatpush.xpose.msra.mxu0 0.0
    %378 = vmatpush.xpose.msra.mxu0 0.0
    %379 = vmatpush.xpose.msra.mxu0 0.0
    %380 = vmatpush.xpose.msra.mxu0 0.0
    %381 = vmatpush.xpose.msra.mxu0 %v364
    %382 = vmatmul.f32.gmra.mxu0 %v362
    %v383 = vpop.f32.mrf.mxu0
    %v384 = vadd.f32 0.0, %v383
    %385 = vdwg.mxu0
    %386 = vrot.lane.b32.xlu0 %v278, 64
    %v387 = vpop.permute.xlu0 %386
    %v388 = vsel %vm309, %v264, 0
    %v390 = vsel %vm309, %v387, 0
    %392 = vmatpush.xpose.msra.mxu0 0.0
    %393 = vmatpush.xpose.msra.mxu0 0.0
    %394 = vmatpush.xpose.msra.mxu0 0.0
    %395 = vmatpush.xpose.msra.mxu0 0.0
    %396 = vmatpush.xpose.msra.mxu0 0.0
    %397 = vmatpush.xpose.msra.mxu0 0.0
    %398 = vmatpush.xpose.msra.mxu0 0.0
    %399 = vmatpush.xpose.msra.mxu0 0.0
    %400 = vmatpush.xpose.msra.mxu0 0.0
    %401 = vmatpush.xpose.msra.mxu0 0.0
    %402 = vmatpush.xpose.msra.mxu0 0.0
    %403 = vmatpush.xpose.msra.mxu0 0.0
    %404 = vmatpush.xpose.msra.mxu0 0.0
    %405 = vmatpush.xpose.msra.mxu0 0.0
    %406 = vmatpush.xpose.msra.mxu0 0.0
    %407 = vmatpush.xpose.msra.mxu0 %v390
    %408 = vmatmul.f32.gmra.mxu0 %v388
    %v409 = vpop.f32.mrf.mxu0
    %v410 = vadd.f32 0.0, %v409
    %411 = vdwg.mxu0
    %412 = vrot.lane.b32.xlu0 %v280, 64
    %v413 = vpop.permute.xlu0 %412
    %v414 = vsel %vm309, %v266, 0
    %v416 = vsel %vm309, %v413, 0
    %418 = vmatpush.xpose.msra.mxu0 0.0
    %419 = vmatpush.xpose.msra.mxu0 0.0
    %420 = vmatpush.xpose.msra.mxu0 0.0
    %421 = vmatpush.xpose.msra.mxu0 0.0
    %422 = vmatpush.xpose.msra.mxu0 0.0
    %423 = vmatpush.xpose.msra.mxu0 0.0
    %424 = vmatpush.xpose.msra.mxu0 0.0
    %425 = vmatpush.xpose.msra.mxu0 0.0
    %426 = vmatpush.xpose.msra.mxu0 0.0
    %427 = vmatpush.xpose.msra.mxu0 0.0
    %428 = vmatpush.xpose.msra.mxu0 0.0
    %429 = vmatpush.xpose.msra.mxu0 0.0
    %430 = vmatpush.xpose.msra.mxu0 0.0
    %431 = vmatpush.xpose.msra.mxu0 0.0
    %432 = vmatpush.xpose.msra.mxu0 0.0
    %433 = vmatpush.xpose.msra.mxu0 %v416
    %434 = vmatmul.f32.gmra.mxu0 %v414
    %v435 = vpop.f32.mrf.mxu0
    %v436 = vadd.f32 0.0, %v435
    %437 = vdwg.mxu0
    %438 = vrot.lane.b32.xlu0 %v282, 64
    %v439 = vpop.permute.xlu0 %438
    %v440 = vsel %vm309, %v268, 0
    %v442 = vsel %vm309, %v439, 0
    %444 = vmatpush.xpose.msra.mxu0 0.0
    %445 = vmatpush.xpose.msra.mxu0 0.0
    %446 = vmatpush.xpose.msra.mxu0 0.0
    %447 = vmatpush.xpose.msra.mxu0 0.0
    %448 = vmatpush.xpose.msra.mxu0 0.0
    %449 = vmatpush.xpose.msra.mxu0 0.0
    %450 = vmatpush.xpose.msra.mxu0 0.0
    %451 = vmatpush.xpose.msra.mxu0 0.0
    %452 = vmatpush.xpose.msra.mxu0 0.0
    %453 = vmatpush.xpose.msra.mxu0 0.0
    %454 = vmatpush.xpose.msra.mxu0 0.0
    %455 = vmatpush.xpose.msra.mxu0 0.0
    %456 = vmatpush.xpose.msra.mxu0 0.0
    %457 = vmatpush.xpose.msra.mxu0 0.0
    %458 = vmatpush.xpose.msra.mxu0 0.0
    %459 = vmatpush.xpose.msra.mxu0 %v442
    %460 = vmatmul.f32.gmra.mxu0 %v440
    %v461 = vpop.f32.mrf.mxu0
    %v462 = vadd.f32 0.0, %v461
    %463 = vdwg.mxu0
    %464 = vrot.lane.b32.xlu0 %v284, 64
    %v465 = vpop.permute.xlu0 %464
    %v466 = vsel %vm309, %v270, 0
    %v468 = vsel %vm309, %v465, 0
    %470 = vmatpush.xpose.msra.mxu0 0.0
    %471 = vmatpush.xpose.msra.mxu0 0.0
    %472 = vmatpush.xpose.msra.mxu0 0.0
    %473 = vmatpush.xpose.msra.mxu0 0.0
    %474 = vmatpush.xpose.msra.mxu0 0.0
    %475 = vmatpush.xpose.msra.mxu0 0.0
    %476 = vmatpush.xpose.msra.mxu0 0.0
    %477 = vmatpush.xpose.msra.mxu0 0.0
    %478 = vmatpush.xpose.msra.mxu0 0.0
    %479 = vmatpush.xpose.msra.mxu0 0.0
    %480 = vmatpush.xpose.msra.mxu0 0.0
    %481 = vmatpush.xpose.msra.mxu0 0.0
    %482 = vmatpush.xpose.msra.mxu0 0.0
    %483 = vmatpush.xpose.msra.mxu0 0.0
    %484 = vmatpush.xpose.msra.mxu0 0.0
    %485 = vmatpush.xpose.msra.mxu0 %v468
    %486 = vmatmul.f32.gmra.mxu0 %v466
    %v487 = vpop.f32.mrf.mxu0
    %v488 = vadd.f32 0.0, %v487
    %489 = vdwg.mxu0
    %490 = vrot.lane.b32.xlu0 %v286, 64
    %v491 = vpop.permute.xlu0 %490
    %v492 = vsel %vm309, %v272, 0
    %v494 = vsel %vm309, %v491, 0
    %496 = vmatpush.xpose.msra.mxu0 0.0
    %497 = vmatpush.xpose.msra.mxu0 0.0
    %498 = vmatpush.xpose.msra.mxu0 0.0
    %499 = vmatpush.xpose.msra.mxu0 0.0
    %500 = vmatpush.xpose.msra.mxu0 0.0
    %501 = vmatpush.xpose.msra.mxu0 0.0
    %502 = vmatpush.xpose.msra.mxu0 0.0
    %503 = vmatpush.xpose.msra.mxu0 0.0
    %504 = vmatpush.xpose.msra.mxu0 0.0
    %505 = vmatpush.xpose.msra.mxu0 0.0
    %506 = vmatpush.xpose.msra.mxu0 0.0
    %507 = vmatpush.xpose.msra.mxu0 0.0
    %508 = vmatpush.xpose.msra.mxu0 0.0
    %509 = vmatpush.xpose.msra.mxu0 0.0
    %510 = vmatpush.xpose.msra.mxu0 0.0
    %511 = vmatpush.xpose.msra.mxu0 %v494
    %512 = vmatmul.f32.gmra.mxu0 %v492
    %v513 = vpop.f32.mrf.mxu0
    %v514 = vadd.f32 0.0, %v513
    %515 = vdwg.mxu0
    %v516 = vsel %vm309, %v332, -inf
    %517 = vmax.xlane.f32.xlu0 %v516
    %v518 = vpop.xlane.xlu0 %517
    %v519 = vsel %vm309, %v358, -inf
    %520 = vmax.xlane.f32.xlu0 %v519
    %v521 = vpop.xlane.xlu0 %520
    %v522 = vsel %vm309, %v384, -inf
    %523 = vmax.xlane.f32.xlu0 %v522
    %v524 = vpop.xlane.xlu0 %523
    %v525 = vsel %vm309, %v410, -inf
    %526 = vmax.xlane.f32.xlu0 %v525
    %v527 = vpop.xlane.xlu0 %526
    %v528 = vsel %vm309, %v436, -inf
    %529 = vmax.xlane.f32.xlu0 %v528
    %v530 = vpop.xlane.xlu0 %529
    %v531 = vsel %vm309, %v462, -inf
    %532 = vmax.xlane.f32.xlu0 %v531
    %v533 = vpop.xlane.xlu0 %532
    %v534 = vsel %vm309, %v488, -inf
    %535 = vmax.xlane.f32.xlu0 %v534
    %v536 = vpop.xlane.xlu0 %535
    %v537 = vsel %vm309, %v514, -inf
    %538 = vmax.xlane.f32.xlu0 %v537
    %v539 = vpop.xlane.xlu0 %538
    %v540 = vsub.f32 %v332, %v518
    %v541 = vsub.f32 %v358, %v521
    %v542 = vsub.f32 %v384, %v524
    %v543 = vsub.f32 %v410, %v527
    %v544 = vsub.f32 %v436, %v530
    %v545 = vsub.f32 %v462, %v533
    %v546 = vsub.f32 %v488, %v536
    %v547 = vsub.f32 %v514, %v539
    %v548 = vmul.f32 %v540, 1.442695
    %v549 = vpow.pop %v548
    %v550 = vmul.f32 %v541, 1.442695
    %v551 = vpow.pop %v550
    %v552 = vmul.f32 %v542, 1.442695
    %v553 = vpow.pop %v552
    %v554 = vmul.f32 %v543, 1.442695
    %v555 = vpow.pop %v554
    %v556 = vmul.f32 %v544, 1.442695
    %v557 = vpow.pop %v556
    %v558 = vmul.f32 %v545, 1.442695
    %v559 = vpow.pop %v558
    %v560 = vmul.f32 %v546, 1.442695
    %v561 = vpow.pop %v560
    %v562 = vmul.f32 %v547, 1.442695
    %v563 = vpow.pop %v562
    %v564 = vsel %vm309, %v549, 0.0
    %565 = vadd.xlane.f32.xlu0 %v564
    %v566 = vpop.xlane.xlu0 %565
    %v567 = vsel %vm309, %v551, 0.0
    %568 = vadd.xlane.f32.xlu0 %v567
    %v569 = vpop.xlane.xlu0 %568
    %v570 = vsel %vm309, %v553, 0.0
    %571 = vadd.xlane.f32.xlu0 %v570
    %v572 = vpop.xlane.xlu0 %571
    %v573 = vsel %vm309, %v555, 0.0
    %574 = vadd.xlane.f32.xlu0 %v573
    %v575 = vpop.xlane.xlu0 %574
    %v576 = vsel %vm309, %v557, 0.0
    %577 = vadd.xlane.f32.xlu0 %v576
    %v578 = vpop.xlane.xlu0 %577
    %v579 = vsel %vm309, %v559, 0.0
    %580 = vadd.xlane.f32.xlu0 %v579
    %v581 = vpop.xlane.xlu0 %580
    %v582 = vsel %vm309, %v561, 0.0
    %583 = vadd.xlane.f32.xlu0 %v582
    %v584 = vpop.xlane.xlu0 %583
    %v585 = vsel %vm309, %v563, 0.0
    %586 = vadd.xlane.f32.xlu0 %v585
    %v587 = vpop.xlane.xlu0 %586
    %v588 = vrcp.pop %v566
    %v589 = vrcp.pop %v569
    %v590 = vrcp.pop %v572
    %v591 = vrcp.pop %v575
    %v592 = vrcp.pop %v578
    %v593 = vrcp.pop %v581
    %v594 = vrcp.pop %v584
    %v595 = vrcp.pop %v587
    %v596 = vmul.f32 %v549, %v588
    %v597 = vmul.f32 %v551, %v589
    %v598 = vmul.f32 %v553, %v590
    %v599 = vmul.f32 %v555, %v591
    %v600 = vmul.f32 %v557, %v592
    %v601 = vmul.f32 %v559, %v593
    %v602 = vmul.f32 %v561, %v594
    %v603 = vmul.f32 %v563, %v595
    %v605 = vsel %vm309, %v596, 0
    %607 = vmatpush.msra.mxu0 0.0
    %608 = vmatpush.msra.mxu0 0.0
    %609 = vmatpush.msra.mxu0 0.0
    %610 = vmatpush.msra.mxu0 0.0
    %611 = vmatpush.msra.mxu0 0.0
    %612 = vmatpush.msra.mxu0 0.0
    %613 = vmatpush.msra.mxu0 0.0
    %614 = vmatpush.msra.mxu0 0.0
    %615 = vmatpush.msra.mxu0 0.0
    %616 = vmatpush.msra.mxu0 0.0
    %617 = vmatpush.msra.mxu0 0.0
    %618 = vmatpush.msra.mxu0 0.0
    %619 = vmatpush.msra.mxu0 0.0
    %620 = vmatpush.msra.mxu0 0.0
    %621 = vmatpush.msra.mxu0 0.0
    %622 = vmatpush.msra.mxu0 %v200
    %623 = vmatmul.f32.gmra.mxu0 %v605
    %v624 = vpop.f32.mrf.mxu0
    %v625 = vadd.f32 0.0, %v624
    %626 = vdwg.mxu0
    %v628 = vsel %vm309, %v597, 0
    %630 = vmatpush.msra.mxu0 0.0
    %631 = vmatpush.msra.mxu0 0.0
    %632 = vmatpush.msra.mxu0 0.0
    %633 = vmatpush.msra.mxu0 0.0
    %634 = vmatpush.msra.mxu0 0.0
    %635 = vmatpush.msra.mxu0 0.0
    %636 = vmatpush.msra.mxu0 0.0
    %637 = vmatpush.msra.mxu0 0.0
    %638 = vmatpush.msra.mxu0 0.0
    %639 = vmatpush.msra.mxu0 0.0
    %640 = vmatpush.msra.mxu0 0.0
    %641 = vmatpush.msra.mxu0 0.0
    %642 = vmatpush.msra.mxu0 0.0
    %643 = vmatpush.msra.mxu0 0.0
    %644 = vmatpush.msra.mxu0 0.0
    %645 = vmatpush.msra.mxu0 %v203
    %646 = vmatmul.f32.gmra.mxu0 %v628
    %v647 = vpop.f32.mrf.mxu0
    %v648 = vadd.f32 0.0, %v647
    %649 = vdwg.mxu0
    %v651 = vsel %vm309, %v598, 0
    %653 = vmatpush.msra.mxu0 0.0
    %654 = vmatpush.msra.mxu0 0.0
    %655 = vmatpush.msra.mxu0 0.0
    %656 = vmatpush.msra.mxu0 0.0
    %657 = vmatpush.msra.mxu0 0.0
    %658 = vmatpush.msra.mxu0 0.0
    %659 = vmatpush.msra.mxu0 0.0
    %660 = vmatpush.msra.mxu0 0.0
    %661 = vmatpush.msra.mxu0 0.0
    %662 = vmatpush.msra.mxu0 0.0
    %663 = vmatpush.msra.mxu0 0.0
    %664 = vmatpush.msra.mxu0 0.0
    %665 = vmatpush.msra.mxu0 0.0
    %666 = vmatpush.msra.mxu0 0.0
    %667 = vmatpush.msra.mxu0 0.0
    %668 = vmatpush.msra.mxu0 %v290
    %669 = vmatmul.f32.gmra.mxu0 %v651
    %v670 = vpop.f32.mrf.mxu0
    %v671 = vadd.f32 0.0, %v670
    %672 = vdwg.mxu0
    %v674 = vsel %vm309, %v599, 0
    %676 = vmatpush.msra.mxu0 0.0
    %677 = vmatpush.msra.mxu0 0.0
    %678 = vmatpush.msra.mxu0 0.0
    %679 = vmatpush.msra.mxu0 0.0
    %680 = vmatpush.msra.mxu0 0.0
    %681 = vmatpush.msra.mxu0 0.0
    %682 = vmatpush.msra.mxu0 0.0
    %683 = vmatpush.msra.mxu0 0.0
    %684 = vmatpush.msra.mxu0 0.0
    %685 = vmatpush.msra.mxu0 0.0
    %686 = vmatpush.msra.mxu0 0.0
    %687 = vmatpush.msra.mxu0 0.0
    %688 = vmatpush.msra.mxu0 0.0
    %689 = vmatpush.msra.mxu0 0.0
    %690 = vmatpush.msra.mxu0 0.0
    %691 = vmatpush.msra.mxu0 %v292
    %692 = vmatmul.f32.gmra.mxu0 %v674
    %v693 = vpop.f32.mrf.mxu0
    %v694 = vadd.f32 0.0, %v693
    %695 = vdwg.mxu0
    %v697 = vsel %vm309, %v600, 0
    %699 = vmatpush.msra.mxu0 0.0
    %700 = vmatpush.msra.mxu0 0.0
    %701 = vmatpush.msra.mxu0 0.0
    %702 = vmatpush.msra.mxu0 0.0
    %703 = vmatpush.msra.mxu0 0.0
    %704 = vmatpush.msra.mxu0 0.0
    %705 = vmatpush.msra.mxu0 0.0
    %706 = vmatpush.msra.mxu0 0.0
    %707 = vmatpush.msra.mxu0 0.0
    %708 = vmatpush.msra.mxu0 0.0
    %709 = vmatpush.msra.mxu0 0.0
    %710 = vmatpush.msra.mxu0 0.0
    %711 = vmatpush.msra.mxu0 0.0
    %712 = vmatpush.msra.mxu0 0.0
    %713 = vmatpush.msra.mxu0 0.0
    %714 = vmatpush.msra.mxu0 %v296
    %715 = vmatmul.f32.gmra.mxu0 %v697
    %v716 = vpop.f32.mrf.mxu0
    %v717 = vadd.f32 0.0, %v716
    %718 = vdwg.mxu0
    %v720 = vsel %vm309, %v601, 0
    %722 = vmatpush.msra.mxu0 0.0
    %723 = vmatpush.msra.mxu0 0.0
    %724 = vmatpush.msra.mxu0 0.0
    %725 = vmatpush.msra.mxu0 0.0
    %726 = vmatpush.msra.mxu0 0.0
    %727 = vmatpush.msra.mxu0 0.0
    %728 = vmatpush.msra.mxu0 0.0
    %729 = vmatpush.msra.mxu0 0.0
    %730 = vmatpush.msra.mxu0 0.0
    %731 = vmatpush.msra.mxu0 0.0
    %732 = vmatpush.msra.mxu0 0.0
    %733 = vmatpush.msra.mxu0 0.0
    %734 = vmatpush.msra.mxu0 0.0
    %735 = vmatpush.msra.mxu0 0.0
    %736 = vmatpush.msra.mxu0 0.0
    %737 = vmatpush.msra.mxu0 %v298
    %738 = vmatmul.f32.gmra.mxu0 %v720
    %v739 = vpop.f32.mrf.mxu0
    %v740 = vadd.f32 0.0, %v739
    %741 = vdwg.mxu0
    %v743 = vsel %vm309, %v602, 0
    %745 = vmatpush.msra.mxu0 0.0
    %746 = vmatpush.msra.mxu0 0.0
    %747 = vmatpush.msra.mxu0 0.0
    %748 = vmatpush.msra.mxu0 0.0
    %749 = vmatpush.msra.mxu0 0.0
    %750 = vmatpush.msra.mxu0 0.0
    %751 = vmatpush.msra.mxu0 0.0
    %752 = vmatpush.msra.mxu0 0.0
    %753 = vmatpush.msra.mxu0 0.0
    %754 = vmatpush.msra.mxu0 0.0
    %755 = vmatpush.msra.mxu0 0.0
    %756 = vmatpush.msra.mxu0 0.0
    %757 = vmatpush.msra.mxu0 0.0
    %758 = vmatpush.msra.mxu0 0.0
    %759 = vmatpush.msra.mxu0 0.0
    %760 = vmatpush.msra.mxu0 %v302
    %761 = vmatmul.f32.gmra.mxu0 %v743
    %v762 = vpop.f32.mrf.mxu0
    %v763 = vadd.f32 0.0, %v762
    %764 = vdwg.mxu0
    %v766 = vsel %vm309, %v603, 0
    %768 = vmatpush.msra.mxu0 0.0
    %769 = vmatpush.msra.mxu0 0.0
    %770 = vmatpush.msra.mxu0 0.0
    %771 = vmatpush.msra.mxu0 0.0
    %772 = vmatpush.msra.mxu0 0.0
    %773 = vmatpush.msra.mxu0 0.0
    %774 = vmatpush.msra.mxu0 0.0
    %775 = vmatpush.msra.mxu0 0.0
    %776 = vmatpush.msra.mxu0 0.0
    %777 = vmatpush.msra.mxu0 0.0
    %778 = vmatpush.msra.mxu0 0.0
    %779 = vmatpush.msra.mxu0 0.0
    %780 = vmatpush.msra.mxu0 0.0
    %781 = vmatpush.msra.mxu0 0.0
    %782 = vmatpush.msra.mxu0 0.0
    %783 = vmatpush.msra.mxu0 %v304
    %784 = vmatmul.f32.gmra.mxu0 %v766
    %v785 = vpop.f32.mrf.mxu0
    %v786 = vadd.f32 0.0, %v785
    %787 = vdwg.mxu0
    %790 = vrot.lane.b32.xlu0 %v671, 8
    %v791 = vpop.permute.xlu0 %790
    %792 = vrot.lane.b32.xlu0 %v694, 8
    %v793 = vpop.permute.xlu0 %792
    %798 = vrot.lane.b32.xlu0 %v717, 16
    %v799 = vpop.permute.xlu0 %798
    %800 = vrot.lane.b32.xlu0 %v740, 16
    %v801 = vpop.permute.xlu0 %800
    %806 = vrot.lane.b32.xlu0 %v763, 24
    %v807 = vpop.permute.xlu0 %806
    %808 = vrot.lane.b32.xlu0 %v786, 24
    %v809 = vpop.permute.xlu0 %808
    %v812 = vsel %vm309, %v625, %v791
    %v813 = vsel %vm309, %v648, %v793
    %vm814 = vcmask 130048
    %v815 = vsel %vm814, %v812, %v799
    %v816 = vsel %vm814, %v813, %v801
    %vm817 = vcmask 195584
    %v818 = vsel %vm817, %v815, %v807
    %v819 = vsel %vm817, %v816, %v809
    %v820 = vld [vmem:[%s6] sm:$0xff]
    %v821 = vld [vmem:[%s6 + $0x8] sm:$0xff]
    %v822 = vld [vmem:[%s6 + $0x10] sm:$0xff]
    %v823 = vld [vmem:[%s6 + $0x18] sm:$0xff]
    %v824 = vld [vmem:[%s7] sm:$0x1]
    %v826 = vperm.slane %v824, 0
    %v828 = vadd.f32 %v154, %v826
    %v829 = vadd.f32 %v157, %v826
    %v830 = vmul.f32 %v828, 0.5
    %v831 = vmul.f32 %v829, 0.5
    %v832 = vmul.f32 %v828, 0.044715
    %v833 = vmul.f32 %v829, 0.044715
    %v834 = vmul.f32 %v832, %v828
    %v835 = vmul.f32 %v833, %v829
    %v836 = vmul.f32 %v834, %v828
    %v837 = vmul.f32 %v835, %v829
    %v838 = vadd.f32 %v828, %v836
    %v839 = vadd.f32 %v829, %v837
    %v840 = vmul.f32 %v838, 0.7978845
    %v841 = vmul.f32 %v839, 0.7978845
    %v842 = vtanh.pop %v840
    %v843 = vtanh.pop %v841
    %v844 = vadd.f32 %v842, 1.0
    %v845 = vadd.f32 %v843, 1.0
    %v846 = vmul.f32 %v830, %v844
    %v847 = vmul.f32 %v831, %v845
    %v848 = vld [vmem:[%s8] sm:$0xff]
    %v849 = vld [vmem:[%s8 + $0x8] sm:$0xff]
    %v850 = vld [vmem:[%s8 + $0x10] sm:$0xff]
    %v851 = vld [vmem:[%s8 + $0x18] sm:$0xff]
    %v852 = vld [vmem:[%s8 + $0x20] sm:$0xff]
    %v853 = vld [vmem:[%s8 + $0x28] sm:$0xff]
    %v854 = vld [vmem:[%s8 + $0x30] sm:$0xff]
    %v855 = vld [vmem:[%s8 + $0x38] sm:$0xff]
    %v856 = vld [vmem:[%s8 + $0x40] sm:$0xff]
    %v857 = vld [vmem:[%s8 + $0x48] sm:$0xff]
    %v858 = vld [vmem:[%s8 + $0x50] sm:$0xff]
    %v859 = vld [vmem:[%s8 + $0x58] sm:$0xff]
    %v860 = vld [vmem:[%s8 + $0x60] sm:$0xff]
    %v861 = vld [vmem:[%s8 + $0x68] sm:$0xff]
    %v862 = vld [vmem:[%s8 + $0x70] sm:$0xff]
    %v863 = vld [vmem:[%s8 + $0x78] sm:$0xff]
    %v864 = vld [vmem:[%s9] sm:$0x1]
    %v866 = vperm.slane %v864, 0
    %868 = vmatpush.msra.mxu0 %v863
    %869 = vmatpush.msra.mxu0 %v862
    %870 = vmatpush.msra.mxu0 %v861
    %871 = vmatpush.msra.mxu0 %v860
    %872 = vmatpush.msra.mxu0 %v859
    %873 = vmatpush.msra.mxu0 %v858
    %874 = vmatpush.msra.mxu0 %v857
    %875 = vmatpush.msra.mxu0 %v856
    %876 = vmatpush.msra.mxu0 %v855
    %877 = vmatpush.msra.mxu0 %v854
    %878 = vmatpush.msra.mxu0 %v853
    %879 = vmatpush.msra.mxu0 %v852
    %880 = vmatpush.msra.mxu0 %v851
    %881 = vmatpush.msra.mxu0 %v850
    %882 = vmatpush.msra.mxu0 %v849
    %883 = vmatpush.msra.mxu0 %v848
    %884 = vmatmul.f32.gmra.mxu0 %v846
    %v885 = vpop.f32.mrf.mxu0
    %v886 = vadd.f32 %v866, %v885
    %887 = vmatmul.f32.gmra.mxu0 %v847
    %v888 = vpop.f32.mrf.mxu0
    %v889 = vadd.f32 %v866, %v888
    %890 = vdwg.mxu0
    %v892 = vsel %vm54, %v818, 0
    %v895 = vsel %vm54, %v819, 0
    %897 = vmatpush.msra.mxu0 0.0
    %898 = vmatpush.msra.mxu0 0.0
    %899 = vmatpush.msra.mxu0 0.0
    %900 = vmatpush.msra.mxu0 0.0
    %901 = vmatpush.msra.mxu0 0.0
    %902 = vmatpush.msra.mxu0 0.0
    %903 = vmatpush.msra.mxu0 0.0
    %904 = vmatpush.msra.mxu0 0.0
    %905 = vmatpush.msra.mxu0 0.0
    %906 = vmatpush.msra.mxu0 0.0
    %907 = vmatpush.msra.mxu0 0.0
    %908 = vmatpush.msra.mxu0 0.0
    %909 = vmatpush.msra.mxu0 %v823
    %910 = vmatpush.msra.mxu0 %v822
    %911 = vmatpush.msra.mxu0 %v821
    %912 = vmatpush.msra.mxu0 %v820
    %913 = vmatmul.f32.gmra.mxu0 %v892
    %v914 = vpop.f32.mrf.mxu0
    %v915 = vadd.f32 %v886, %v914
    %916 = vmatmul.f32.gmra.mxu0 %v895
    %v917 = vpop.f32.mrf.mxu0
    %v918 = vadd.f32 %v889, %v917
    %919 = vdwg.mxu0
    %v920 = vadd.f32 %v915, %v52
    %v921 = vadd.f32 %v918, %v53
    %922 = vst.msk [vmem:[#allocation5] sm:$0xff] %vm54, %v920
    %923 = vst.msk [vmem:[#allocation5 + $0x8] sm:$0xff] %vm54, %v921
    // Predicated region
    $region46: #{tpu_custom_call.1} parent=1 // pred_check
      _
    $region47: #{tpu_custom_call.1} parent=1 // pred_check_branch
      %925 = sbr.rel (0) target = $region49
    $region48: #{tpu_custom_call.1} parent=1 // pred_region
      %927 = vsyncadd [#allocation4], 0
      %s928 = sshll.u32 [#allocation5], 4
      %s929 = int_to_ptr.vmem [resolvable:$true] %s928
      %s930 = sshll.u32 %s10, 4
      %s931 = int_to_ptr.hbm [resolvable:$true] %s930
      %936 = dma.vmem_to_hbm [thread:$0]  %s929, 256, %s931, [#allocation4], 128, 128, 8
    $region49: #{tpu_custom_call.1} parent=1 // pred_fallthru
      _
    // Predicated region
    $region50: #{tpu_custom_call.1} parent=1 // pred_check
      _
    $region51: #{tpu_custom_call.1} parent=1 // pred_check_branch
      %938 = sbr.rel (0) target = $region53
    $region52: #{tpu_custom_call.1} parent=1 // pred_region
      %940 = dma.done [#allocation4], 256
    $region53: #{tpu_custom_call.1} parent=1 // pred_fallthru
      _
    %941 = vsyncpa [#allocation3], 1
    %942 = vsyncpa [#allocation4], 1

</llo_original>
